<compile_context>
chip_gen: v7x
topology: tpu7x:2x2x1
jax: 0.10.0
libtpu: 0.0.40
codegen_flags: <defaults>
</compile_context>

<pallas_src>
import functools

import jax
import jax.numpy as jnp
from jax.experimental import pallas as pl
from jax.experimental.pallas import tpu as pltpu


def _round_up(x, m):
    return (x + m - 1) // m * m


def actor_kernel(task_ref,            # scalar-prefetch (SMEM); only drives index_maps
                 state_ref, w1_ref, w2h_ref, bias_ref,
                 out_ref,
                 *, f1, f2, head_pad, n_actions, sigma_lane,
                 reparam_noise, max_sigma):
    del task_ref  # task only selects which packed weight/bias block was DMA'd in

    # fc1 + relu : bf16 x bf16 -> f32 MXU accumulation, f32 elementwise.
    x = state_ref[...].astype(jnp.bfloat16)                              # (TB, Din)
    h1 = jnp.dot(x, w1_ref[...], preferred_element_type=jnp.float32)
    h1 = jnp.maximum(h1 + bias_ref[0:1, :f1], 0.0)                       # (TB, F1)

    # fc2[task] + relu : left half of the packed per-task weight block.
    w2 = w2h_ref[:, :f2]                                                 # (F1, F2)
    h2 = jnp.dot(h1.astype(jnp.bfloat16), w2,
                 preferred_element_type=jnp.float32)
    h2 = jnp.maximum(h2 + bias_ref[1:2, :f2], 0.0)                       # (TB, F2)

    # Fused lane-dense [mu | sigma] head : right half of the packed block.
    wh = w2h_ref[:, f2:]                                                 # (F2, HP)
    y = jnp.dot(h2.astype(jnp.bfloat16), wh,
                preferred_element_type=jnp.float32)
    y = y + bias_ref[2:3, :head_pad]                                     # (TB, HP)

    # Clamp only the sigma lanes; mu lanes pass through, padded lanes are junk
    # (sliced away outside). Single unmasked lane-dense store.
    col = jax.lax.broadcasted_iota(jnp.int32, y.shape, 1)
    is_sigma = (col >= sigma_lane) & (col < sigma_lane + n_actions)
    out_ref[...] = jnp.where(is_sigma, jnp.clip(y, reparam_noise, max_sigma), y)


def actor_forward(state, task, params, *, batch_tile=128,
                  reparam_noise=1e-6, max_sigma=2.0):
    """Pallas forward. params = dict(w1, w2h, biases, meta)."""
    w1, w2h, biases, meta = params["w1"], params["w2h"], params["biases"], params["meta"]
    din = meta["input_dims"]
    f1 = meta["fc1_dims"]
    f2 = meta["fc2_dims"]
    n_actions = meta["n_actions"]
    head_pad = meta["head_pad"]
    sigma_lane = meta["sigma_lane"]
    lb = biases.shape[-1]

    B = state.shape[0]
    bp = _round_up(max(B, 8), 8)           # sublane-pad batch
    tb = min(batch_tile, bp)               # batch tile (grid axis, "parallel")
    bp = _round_up(bp, tb)
    if bp != B:
        state = jnp.pad(state, ((0, bp - B), (0, 0)))

    task_arr = jnp.asarray([task], dtype=jnp.int32)

    kernel = functools.partial(
        actor_kernel, f1=f1, f2=f2, head_pad=head_pad,
        n_actions=n_actions, sigma_lane=sigma_lane,
        reparam_noise=reparam_noise, max_sigma=max_sigma)

    grid_spec = pltpu.PrefetchScalarGridSpec(
        num_scalar_prefetch=1,
        grid=(bp // tb,),
        in_specs=[
            pl.BlockSpec((tb, din), lambda i, t: (i, 0)),                      # state tile
            pl.BlockSpec((din, f1), lambda i, t: (0, 0)),                      # w1 (bf16)
            pl.BlockSpec((None, f1, f2 + head_pad),
                         lambda i, t: (t[0], 0, 0)),                           # [w2 | head][task] (bf16)
            pl.BlockSpec((None, 8, lb), lambda i, t: (t[0], 0, 0)),            # packed biases (f32)
        ],
        out_specs=pl.BlockSpec((tb, head_pad), lambda i, t: (i, 0)),           # [mu | sigma] lane-dense
    )

    out = pl.pallas_call(
        kernel,
        out_shape=jax.ShapeDtypeStruct((bp, head_pad), jnp.float32),
        grid_spec=grid_spec,
        compiler_params=pltpu.CompilerParams(
            dimension_semantics=("parallel",),       # batch tiles shard across TCs on v7x
            vmem_limit_bytes=32 * 1024 * 1024),      # guard; footprint is ~0.3 MB here
    )(task_arr, state, w1, w2h, biases)

    mu = out[:B, :n_actions]
    sigma = out[:B, sigma_lane:sigma_lane + n_actions]
    return mu, sigma


def init_params(key, input_dims, fc1_dims, fc2_dims, n_actions, n_tasks=6,
                weight_dtype=jnp.bfloat16):
    """PyTorch-Linear-style init U(-1/sqrt(fan_in), 1/sqrt(fan_in)), packed layout.

    Weights are (in, out), cast to bf16. Per-task fc2 + lane-dense-padded
    [mu|sigma] head weights are concatenated into one (T, F1, F2+HP) block.
    All biases stay f32 and are packed into one (T, 8, Lb) block.
    """
    assert fc1_dims == fc2_dims, "packed per-task weight block requires fc1_dims == fc2_dims"
    ks = jax.random.split(key, 8)

    def u(k, shape, fan_in):
        bound = 1.0 / jnp.sqrt(jnp.asarray(fan_in, jnp.float32))
        return jax.random.uniform(k, shape, jnp.float32, -bound, bound)

    w1 = u(ks[0], (input_dims, fc1_dims), input_dims)
    b1 = u(ks[1], (fc1_dims,), input_dims)
    w2s = u(ks[2], (n_tasks, fc1_dims, fc2_dims), fc1_dims)
    b2s = u(ks[3], (n_tasks, fc2_dims), fc1_dims)
    wmus = u(ks[4], (n_tasks, fc2_dims, n_actions), fc2_dims)
    bmus = u(ks[5], (n_tasks, n_actions), fc2_dims)
    wsigs = u(ks[6], (n_tasks, fc2_dims, n_actions), fc2_dims)
    bsigs = u(ks[7], (n_tasks, n_actions), fc2_dims)

    head_pad = max(128, _round_up(2 * n_actions, 128))
    sigma_lane = head_pad // 2
    assert n_actions <= sigma_lane

    # Lane-dense head weights: mu in lanes [0:A], sigma in [sigma_lane:sigma_lane+A].
    whs = jnp.zeros((n_tasks, fc2_dims, head_pad), jnp.float32)
    whs = whs.at[:, :, :n_actions].set(wmus)
    whs = whs.at[:, :, sigma_lane:sigma_lane + n_actions].set(wsigs)
    bhs = jnp.zeros((n_tasks, head_pad), jnp.float32)
    bhs = bhs.at[:, :n_actions].set(bmus)
    bhs = bhs.at[:, sigma_lane:sigma_lane + n_actions].set(bsigs)

    # One per-task weight block: [ fc2 weight | padded head weight ]  (bf16).
    w2h = jnp.concatenate([w2s, whs], axis=-1).astype(weight_dtype)     # (T, F1, F2+HP)
    w1 = w1.astype(weight_dtype)

    # One f32 bias block per task (8-sublane padded): row0=b1, row1=b2[t], row2=bh[t].
    lb = max(fc1_dims, fc2_dims, head_pad)
    biases = jnp.zeros((n_tasks, 8, lb), jnp.float32)
    biases = biases.at[:, 0, :fc1_dims].set(jnp.broadcast_to(b1, (n_tasks, fc1_dims)))
    biases = biases.at[:, 1, :fc2_dims].set(b2s)
    biases = biases.at[:, 2, :head_pad].set(bhs)

    meta = dict(input_dims=input_dims, fc1_dims=fc1_dims, fc2_dims=fc2_dims,
                n_actions=n_actions, head_pad=head_pad, sigma_lane=sigma_lane)
    return dict(w1=w1, w2h=w2h, biases=biases, meta=meta)


def actor_forward_ref(state, task, params, *, reparam_noise=1e-6, max_sigma=2.0):
    """Pure-JAX reference matching the kernel's numerics (same packed bf16 weights)."""
    w1, w2h, biases, meta = params["w1"], params["w2h"], params["biases"], params["meta"]
    f1 = meta["fc1_dims"]
    f2 = meta["fc2_dims"]
    n_actions = meta["n_actions"]
    head_pad = meta["head_pad"]
    sigma_lane = meta["sigma_lane"]

    b1 = biases[task, 0, :f1]
    b2 = biases[task, 1, :f2]
    bh = biases[task, 2, :head_pad]
    w2 = w2h[task, :, :f2]
    wh = w2h[task, :, f2:]

    h1 = jnp.maximum(jnp.dot(state.astype(jnp.bfloat16), w1,
                             preferred_element_type=jnp.float32) + b1, 0.0)
    h2 = jnp.maximum(jnp.dot(h1.astype(jnp.bfloat16), w2,
                             preferred_element_type=jnp.float32) + b2, 0.0)
    y = jnp.dot(h2.astype(jnp.bfloat16), wh,
                preferred_element_type=jnp.float32) + bh
    mu = y[:, :n_actions]
    sigma = jnp.clip(y[:, sigma_lane:sigma_lane + n_actions], reparam_noise, max_sigma)
    return mu, sigma


if __name__ == "__main__":
    # Small shapes consistent with the module's forward (batch padded to 8 sublanes).
    batch = 8
    input_dims = 32
    fc1_dims = 128
    fc2_dims = 128
    n_actions = 2
    task = 3  # one of the 6 heads

    key = jax.random.PRNGKey(0)
    k_params, k_state = jax.random.split(key)
    params = init_params(k_params, input_dims, fc1_dims, fc2_dims, n_actions)
    state = jax.random.normal(k_state, (batch, input_dims), jnp.float32)

    mu, sigma = actor_forward(state, task, params)
    jax.block_until_ready((mu, sigma))

    mu_ref, sigma_ref = actor_forward_ref(state, task, params)
    assert mu.shape == (batch, n_actions) and sigma.shape == (batch, n_actions)
    assert jnp.allclose(mu, mu_ref, atol=1e-4, rtol=1e-3)
    assert jnp.allclose(sigma, sigma_ref, atol=1e-4, rtol=1e-3)
    assert bool(jnp.all(sigma >= 1e-6)) and bool(jnp.all(sigma <= 2.0))

    print("KERNEL_OK")
</pallas_src>

<mosaic_0001>
module attributes {stable_mosaic.version = 11 : i64} {
  func.func @actor_kernel(%arg0: i32, %arg1: memref<1xi32, #tpu.memory_space<smem>>, %arg2: memref<8x32xf32, #tpu.memory_space<vmem>>, %arg3: memref<32x128xbf16, #tpu.memory_space<vmem>>, %arg4: memref<1x128x256xbf16, #tpu.memory_space<vmem>>, %arg5: memref<1x8x128xf32, #tpu.memory_space<vmem>>, %arg6: memref<8x128xf32, #tpu.memory_space<vmem>>) attributes {dimension_semantics = [#tpu.dimension_semantics<parallel>], iteration_bounds = array<i64: 1>, scalar_prefetch = 1 : i64, scratch_operands = 0 : i64, tpu.core_type = #tpu.core_type<tc>, window_params = [{transform_indices = @transform_0, window_bounds = array<i64: 8, 32>}, {pipeline_mode = #tpu.pipeline_mode<synchronous>, transform_indices = @transform_1, window_bounds = array<i64: 32, 128>}, {transform_indices = @transform_2, window_bounds = array<i64: 1, 128, 256>}, {transform_indices = @transform_3, window_bounds = array<i64: 1, 8, 128>}, {transform_indices = @transform_4, window_bounds = array<i64: 8, 128>}]} {
    %c0 = arith.constant 0 : index
    %c0_0 = arith.constant 0 : index
    %0 = vector.load %arg2[%c0, %c0_0] : memref<8x32xf32, #tpu.memory_space<vmem>>, vector<8x32xf32>
    %1 = arith.truncf %0 : vector<8x32xf32> to vector<8x32xbf16>
    %c0_1 = arith.constant 0 : index
    %c0_2 = arith.constant 0 : index
    %2 = vector.load %arg3[%c0_1, %c0_2] : memref<32x128xbf16, #tpu.memory_space<vmem>>, vector<32x128xbf16>
    %cst = arith.constant dense<0.000000e+00> : vector<8x128xf32>
    %3 = tpu.matmul %1, %2, %cst {dimension_numbers = #tpu.dot_dimension_numbers<[1], [0], [0], [1], [0, 0, 1, 1], [], []>} : vector<8x32xbf16>, vector<32x128xbf16>, vector<8x128xf32> -> vector<8x128xf32>
    %c0_3 = arith.constant 0 : index
    %c0_4 = arith.constant 0 : index
    %c0_5 = arith.constant 0 : index
    %4 = vector.load %arg5[%c0_3, %c0_4, %c0_5] : memref<1x8x128xf32, #tpu.memory_space<vmem>>, vector<1x1x128xf32>
    %5 = vector.shape_cast %4 : vector<1x1x128xf32> to vector<1x128xf32>
    %6 = vector.broadcast %5 : vector<1x128xf32> to vector<8x128xf32>
    %7 = arith.addf %3, %6 : vector<8x128xf32>
    %cst_6 = arith.constant 0.000000e+00 : f32
    %8 = vector.broadcast %cst_6 : f32 to vector<8x128xf32>
    %9 = arith.maximumf %7, %8 : vector<8x128xf32>
    %c0_7 = arith.constant 0 : index
    %c0_8 = arith.constant 0 : index
    %c0_9 = arith.constant 0 : index
    %10 = vector.load %arg4[%c0_7, %c0_8, %c0_9] : memref<1x128x256xbf16, #tpu.memory_space<vmem>>, vector<1x128x128xbf16>
    %11 = vector.shape_cast %10 : vector<1x128x128xbf16> to vector<128x128xbf16>
    %12 = arith.truncf %9 : vector<8x128xf32> to vector<8x128xbf16>
    %cst_10 = arith.constant dense<0.000000e+00> : vector<8x128xf32>
    %13 = tpu.matmul %12, %11, %cst_10 {dimension_numbers = #tpu.dot_dimension_numbers<[1], [0], [0], [1], [0, 0, 1, 1], [], []>} : vector<8x128xbf16>, vector<128x128xbf16>, vector<8x128xf32> -> vector<8x128xf32>
    %c0_11 = arith.constant 0 : index
    %c1 = arith.constant 1 : index
    %c0_12 = arith.constant 0 : index
    %14 = vector.load %arg5[%c0_11, %c1, %c0_12] : memref<1x8x128xf32, #tpu.memory_space<vmem>>, vector<1x1x128xf32>
    %15 = vector.shape_cast %14 : vector<1x1x128xf32> to vector<1x128xf32>
    %16 = vector.broadcast %15 : vector<1x128xf32> to vector<8x128xf32>
    %17 = arith.addf %13, %16 : vector<8x128xf32>
    %cst_13 = arith.constant 0.000000e+00 : f32
    %18 = vector.broadcast %cst_13 : f32 to vector<8x128xf32>
    %19 = arith.maximumf %17, %18 : vector<8x128xf32>
    %c0_14 = arith.constant 0 : index
    %c0_15 = arith.constant 0 : index
    %c128 = arith.constant 128 : index
    %20 = vector.load %arg4[%c0_14, %c0_15, %c128] : memref<1x128x256xbf16, #tpu.memory_space<vmem>>, vector<1x128x128xbf16>
    %21 = vector.shape_cast %20 : vector<1x128x128xbf16> to vector<128x128xbf16>
    %22 = arith.truncf %19 : vector<8x128xf32> to vector<8x128xbf16>
    %cst_16 = arith.constant dense<0.000000e+00> : vector<8x128xf32>
    %23 = tpu.matmul %22, %21, %cst_16 {dimension_numbers = #tpu.dot_dimension_numbers<[1], [0], [0], [1], [0, 0, 1, 1], [], []>} : vector<8x128xbf16>, vector<128x128xbf16>, vector<8x128xf32> -> vector<8x128xf32>
    %c0_17 = arith.constant 0 : index
    %c2 = arith.constant 2 : index
    %c0_18 = arith.constant 0 : index
    %24 = vector.load %arg5[%c0_17, %c2, %c0_18] : memref<1x8x128xf32, #tpu.memory_space<vmem>>, vector<1x1x128xf32>
    %25 = vector.shape_cast %24 : vector<1x1x128xf32> to vector<1x128xf32>
    %26 = vector.broadcast %25 : vector<1x128xf32> to vector<8x128xf32>
    %27 = arith.addf %23, %26 : vector<8x128xf32>
    %28 = tpu.iota {dimensions = array<i32: 1>} : vector<8x128xi32>
    %c64_i32 = arith.constant 64 : i32
    %29 = vector.broadcast %c64_i32 : i32 to vector<8x128xi32>
    %30 = arith.cmpi sge, %28, %29 : vector<8x128xi32>
    %c66_i32 = arith.constant 66 : i32
    %31 = vector.broadcast %c66_i32 : i32 to vector<8x128xi32>
    %32 = arith.cmpi slt, %28, %31 : vector<8x128xi32>
    %33 = arith.andi %30, %32 : vector<8x128xi1>
    %cst_19 = arith.constant 9.99999997E-7 : f32
    %cst_20 = arith.constant 2.000000e+00 : f32
    %34 = vector.broadcast %cst_19 : f32 to vector<8x128xf32>
    %35 = arith.maximumf %34, %27 : vector<8x128xf32>
    %36 = vector.broadcast %cst_20 : f32 to vector<8x128xf32>
    %37 = arith.minimumf %36, %35 : vector<8x128xf32>
    %38 = arith.select %33, %37, %27 : vector<8x128xi1>, vector<8x128xf32>
    %c0_21 = arith.constant 0 : index
    %c0_22 = arith.constant 0 : index
    %39 = vector.load %arg6[%c0_21, %c0_22] : memref<8x128xf32, #tpu.memory_space<vmem>>, vector<8x128xf32>
    tpu.vector_store %arg6[%c0_21, %c0_22], %38 {strides = array<i32>} : memref<8x128xf32, #tpu.memory_space<vmem>>, vector<8x128xf32>,
    return
  }
  func.func @transform_0(%arg0: i32, %arg1: memref<1xi32, #tpu.memory_space<smem>>) -> (i32, i32) {
    %c0_i32 = arith.constant 0 : i32
    %c0_i32_0 = arith.constant 0 : i32
    return %arg0, %c0_i32 : i32, i32
  }
  func.func @transform_1(%arg0: i32, %arg1: memref<1xi32, #tpu.memory_space<smem>>) -> (i32, i32) {
    %c0_i32 = arith.constant 0 : i32
    %c0_i32_0 = arith.constant 0 : i32
    %c0_i32_1 = arith.constant 0 : i32
    return %c0_i32, %c0_i32_0 : i32, i32
  }
  func.func @transform_2(%arg0: i32, %arg1: memref<1xi32, #tpu.memory_space<smem>>) -> (i32, i32, i32) {
    %c0 = arith.constant 0 : index
    %0 = memref.load %arg1[%c0] : memref<1xi32, #tpu.memory_space<smem>>
    %c0_i32 = arith.constant 0 : i32
    %c0_i32_0 = arith.constant 0 : i32
    %c0_i32_1 = arith.constant 0 : i32
    return %0, %c0_i32, %c0_i32_0 : i32, i32, i32
  }
  func.func @transform_3(%arg0: i32, %arg1: memref<1xi32, #tpu.memory_space<smem>>) -> (i32, i32, i32) {
    %c0 = arith.constant 0 : index
    %0 = memref.load %arg1[%c0] : memref<1xi32, #tpu.memory_space<smem>>
    %c0_i32 = arith.constant 0 : i32
    %c0_i32_0 = arith.constant 0 : i32
    %c0_i32_1 = arith.constant 0 : i32
    return %0, %c0_i32, %c0_i32_0 : i32, i32, i32
  }
  func.func @transform_4(%arg0: i32, %arg1: memref<1xi32, #tpu.memory_space<smem>>) -> (i32, i32) {
    %c0_i32 = arith.constant 0 : i32
    %c0_i32_0 = arith.constant 0 : i32
    return %arg0, %c0_i32 : i32, i32
  }
}

</mosaic_0001>

<llo_original>
// kernel: tpu_custom_call.1
$region0: #{tpu_custom_call.1}
  #allocation0 [shape = 'u32[]', space=smem, size = 0x4, offset = 0x4, fixed_abs, tag = 'smem constant byte address 0x4 - core index']
  #allocation1 [shape = 'u32[144,128]{1,0:T(1,128)}', space=vmem, size = 0x12000, scoped, tag = 'internal scratch']
  #allocation2 [shape = 's32[1]{0}', space=sflag, size = 0x4, scoped, tag = 'scoped memory for tpu_custom_call.1']
  #allocation3 [shape = 's32[1]{0:T(128)S(6)}', space=smem, size = 0x200, scoped, tag = 'prefetched SMEM operand 0']
  %s0 = inlined_call_operand.<no memory space> [shape: s32[1], index: 0, kind: input, shape index: {}]
  %s1 = inlined_call_operand.hbm [shape: f32[8,32], index: 1, kind: input, shape index: {}]
  %s2 = inlined_call_operand.hbm [shape: bf16[32,128], index: 2, kind: input, shape index: {}]
  %s3 = inlined_call_operand.hbm [shape: bf16[6,128,256], index: 3, kind: input, shape index: {}]
  %s4 = inlined_call_operand.hbm [shape: f32[6,8,128], index: 4, kind: input, shape index: {}]
  %s5 = inlined_call_operand.hbm [shape: f32[8,128], index: 5, kind: output, shape index: {}]
  %s6 = sld [smem:[#allocation0]]
  $region42: #{tpu_custom_call.1} parent=0
    _
  %s8 = ssub.s32 1, %s6
  %s9 = scalar_select 0, %s8, %s6
  %10 = sst [smem:[#allocation3]] %s0
  $region1: #{tpu_custom_call.1} parent=0
    #allocation4 [shape = 'u8[4096]{0}', space=vmem, size = 0x1000, scoped, tag = 'input window, operand 1, single buffered']
    #allocation5 [shape = 's32[1]{0}', space=sflag, size = 0x4, scoped, tag = 'scoped memory for tpu_custom_call.1']
    #allocation6 [shape = 's32[1]{0}', space=sflag, size = 0x4, scoped, tag = 'scoped memory for tpu_custom_call.1']
    #allocation7 [shape = 'u8[8192]{0}', space=vmem, size = 0x2000, scoped, tag = 'input window, operand 2, single buffered']
    #allocation8 [shape = 's32[1]{0}', space=sflag, size = 0x4, scoped, tag = 'scoped memory for tpu_custom_call.1']
    #allocation9 [shape = 'u8[65536]{0}', space=vmem, size = 0x10000, scoped, tag = 'input window, operand 3, single buffered']
    #allocation10 [shape = 'u8[4096]{0}', space=vmem, size = 0x1000, scoped, tag = 'input window, operand 4, single buffered']
    #allocation11 [shape = 's32[1]{0}', space=sflag, size = 0x4, scoped, tag = 'scoped memory for tpu_custom_call.1']
    #allocation12 [shape = 'u8[4096]{0}', space=vmem, size = 0x1000, scoped, tag = 'output window, operand 0, single buffered']
    %11 = vsyncpa [#allocation5], 0
    %12 = vsyncpa [#allocation8], 0
    %13 = vsyncpa [#allocation11], 0
    %14 = vsyncpa [#allocation6], 0
    // Predicated region
    $region2: #{tpu_custom_call.1} parent=1 // pred_check
      _
    $region3: #{tpu_custom_call.1} parent=1 // pred_check_branch
      %16 = sbr.rel (0) target = $region5
    $region4: #{tpu_custom_call.1} parent=1 // pred_region
      %s18 = ssub.s32 128, 128
      %19 = vsyncadd [#allocation5], %s18
      %s21 = sshll.u32 [#allocation4], 4
      %s22 = int_to_ptr.vmem [resolvable:$true] %s21
      %24 = dma.hbm_to_vmem [thread:$0]  %s1, 128, %s22, [#allocation5]
    $region5: #{tpu_custom_call.1} parent=1 // pred_fallthru
      _
    // Predicated region
    $region6: #{tpu_custom_call.1} parent=1 // pred_check
      _
    $region7: #{tpu_custom_call.1} parent=1 // pred_check_branch
      %26 = sbr.rel (0) target = $region9
    $region8: #{tpu_custom_call.1} parent=1 // pred_region
      %s28 = ssub.s32 256, 256
      %29 = vsyncadd [#allocation8], %s28
      %s30 = sshll.u32 [#allocation7], 4
      %s31 = int_to_ptr.vmem [resolvable:$true] %s30
      %36 = dma.hbm_to_vmem [thread:$0]  %s2, 256, %s31, [#allocation8], 64, 64, 4
    $region9: #{tpu_custom_call.1} parent=1 // pred_fallthru
      _
    // Predicated region
    $region10: #{tpu_custom_call.1} parent=1 // pred_check
      _
    $region11: #{tpu_custom_call.1} parent=1 // pred_check_branch
      %38 = sbr.rel (0) target = $region13
    $region12: #{tpu_custom_call.1} parent=1 // pred_region
      %s39 = sld [smem:[#allocation3]]
      %s41 = ssub.s32 2048, 2048
      %42 = vsyncadd [#allocation8], %s41
      %s43 = smul.addr %s39, 32
      %s44 = smul.addr %s43, 64
      %s45 = scalar_lea.hbm %s3, %s44
      %s46 = sshll.u32 [#allocation9], 4
      %s47 = int_to_ptr.vmem [resolvable:$true] %s46
      %52 = dma.hbm_to_vmem [thread:$0]  %s45, 2048, %s47, [#allocation8], 128, 128, 8
    $region13: #{tpu_custom_call.1} parent=1 // pred_fallthru
      _
    // Predicated region
    $region14: #{tpu_custom_call.1} parent=1 // pred_check
      _
    $region15: #{tpu_custom_call.1} parent=1 // pred_check_branch
      %54 = sbr.rel (0) target = $region17
    $region16: #{tpu_custom_call.1} parent=1 // pred_region
      %s55 = sld [smem:[#allocation3]]
      %s57 = ssub.s32 128, 128
      %58 = vsyncadd [#allocation11], %s57
      %s59 = smul.addr %s55, 128
      %s60 = scalar_lea.hbm %s4, %s59
      %s62 = sshll.u32 [#allocation10], 4
      %s63 = int_to_ptr.vmem [resolvable:$true] %s62
      %65 = dma.hbm_to_vmem [thread:$0]  %s60, 128, %s63, [#allocation11]
    $region17: #{tpu_custom_call.1} parent=1 // pred_fallthru
      _
    // Predicated region
    $region18: #{tpu_custom_call.1} parent=1 // pred_check
      _
    $region19: #{tpu_custom_call.1} parent=1 // pred_check_branch
      %67 = sbr.rel (0) target = $region21
    $region20: #{tpu_custom_call.1} parent=1 // pred_region
      %68 = dma.done [#allocation5], 128
    $region21: #{tpu_custom_call.1} parent=1 // pred_fallthru
      _
    // Predicated region
    $region22: #{tpu_custom_call.1} parent=1 // pred_check
      _
    $region23: #{tpu_custom_call.1} parent=1 // pred_check_branch
      %70 = sbr.rel (0) target = $region25
    $region24: #{tpu_custom_call.1} parent=1 // pred_region
      %71 = dma.done [#allocation8], 256
    $region25: #{tpu_custom_call.1} parent=1 // pred_fallthru
      _
    // Predicated region
    $region26: #{tpu_custom_call.1} parent=1 // pred_check
      _
    $region27: #{tpu_custom_call.1} parent=1 // pred_check_branch
      %73 = sbr.rel (0) target = $region29
    $region28: #{tpu_custom_call.1} parent=1 // pred_region
      %74 = dma.done [#allocation8], 2048
    $region29: #{tpu_custom_call.1} parent=1 // pred_fallthru
      _
    // Predicated region
    $region30: #{tpu_custom_call.1} parent=1 // pred_check
      _
    $region31: #{tpu_custom_call.1} parent=1 // pred_check_branch
      %76 = sbr.rel (0) target = $region33
    $region32: #{tpu_custom_call.1} parent=1 // pred_region
      %77 = dma.done [#allocation11], 128
    $region33: #{tpu_custom_call.1} parent=1 // pred_fallthru
      _
    %s78 = sld [smem:[#allocation3]]
    %s79 = sld [smem:[#allocation3]]
    %v81 = vld [vmem:[#allocation4] sm:$0xff]
    %v82 = vpack.c.bf16 %v81, %v81
    %v83 = vld [vmem:[#allocation7] sm:$0xf]
    %v84 = vld [vmem:[#allocation7 + $0x4] sm:$0xf]
    %v85 = vld [vmem:[#allocation7 + $0x8] sm:$0xf]
    %v86 = vld [vmem:[#allocation7 + $0xc] sm:$0xf]
    %v87 = vld [vmem:[#allocation10] sm:$0x1]
    %v88 = vlaneseq
    %v89 = vshrl.u32 %v88, 7
    %v90 = vsub.s32 0, %v89
    %v91 = vrot.slane %v87, %v90
    %v96 = vunpack.c.l.b16 %v83
    %v97 = vunpack.c.l.b16 %v84
    %v98 = vunpack.c.l.b16 %v85
    %v99 = vunpack.c.l.b16 %v86
    %v100 = vpack.c.b16 %v97, %v96
    %v101 = vpack.c.b16 %v99, %v98
    %vm104 = vcmask 261120
    %v106 = vsel %vm104, %v82, 0
    %108 = vmatprep.subr.bf16.mxu0 0
    %109 = vmatpush1.bf16.msra.mxu0 %v100
    %110 = vmatprep.subr.bf16.mxu0 0
    %111 = vmatpush1.bf16.msra.mxu0 %v101
    %112 = vmatprep.subr.bf16.mxu0 0
    %113 = vmatpush1.bf16.msra.mxu0 0
    %114 = vmatprep.subr.bf16.mxu0 0
    %115 = vmatpush1.bf16.msra.mxu0 0
    %116 = vmatprep.subr.bf16.mxu0 0
    %117 = vmatpush1.bf16.msra.mxu0 0
    %118 = vmatprep.subr.bf16.mxu0 0
    %119 = vmatpush1.bf16.msra.mxu0 0
    %120 = vmatprep.subr.bf16.mxu0 0
    %121 = vmatpush1.bf16.msra.mxu0 0
    %122 = vmatprep.subr.bf16.mxu0 0
    %123 = vmatpush1.bf16.msra.mxu0 0
    %124 = vmatprep.subr.bf16.mxu0 0
    %125 = vmatpush1.bf16.msra.mxu0 0
    %126 = vmatprep.subr.bf16.mxu0 0
    %127 = vmatpush1.bf16.msra.mxu0 0
    %128 = vmatprep.subr.bf16.mxu0 0
    %129 = vmatpush1.bf16.msra.mxu0 0
    %130 = vmatprep.subr.bf16.mxu0 0
    %131 = vmatpush1.bf16.msra.mxu0 0
    %132 = vmatprep.subr.bf16.mxu0 0
    %133 = vmatpush1.bf16.msra.mxu0 0
    %134 = vmatprep.subr.bf16.mxu0 0
    %135 = vmatpush1.bf16.msra.mxu0 0
    %136 = vmatprep.subr.bf16.mxu0 0
    %137 = vmatpush1.bf16.msra.mxu0 0
    %138 = vmatprep.subr.bf16.mxu0 0
    %139 = vmatpush1.bf16.msra.mxu0 0
    %140 = vmatprep.mubr.bf16.mxu0 0
    %141 = vmatmul.mubr.bf16.gmra.mrb[0].mxu0 %v106
    %v142 = vpop.f32.mrb[0].mxu0
    %v143 = vadd.f32 %v91, %v142
    %v144 = vpop.f32.mrb[0].mxu0
    %v145 = vpop.f32.mrb[0].mxu0
    %v146 = vpop.f32.mrb[0].mxu0
    %147 = vdwg.mxu0
    %v148 = vmax.f32 %v143, 0.0
    %v149 = vld [vmem:[#allocation9] sm:$0xf]
    %v150 = vld [vmem:[#allocation9 + $0x8] sm:$0xf]
    %v151 = vld [vmem:[#allocation9 + $0x10] sm:$0xf]
    %v152 = vld [vmem:[#allocation9 + $0x18] sm:$0xf]
    %v153 = vld [vmem:[#allocation9 + $0x20] sm:$0xf]
    %v154 = vld [vmem:[#allocation9 + $0x28] sm:$0xf]
    %v155 = vld [vmem:[#allocation9 + $0x30] sm:$0xf]
    %v156 = vld [vmem:[#allocation9 + $0x38] sm:$0xf]
    %v157 = vld [vmem:[#allocation9 + $0x40] sm:$0xf]
    %v158 = vld [vmem:[#allocation9 + $0x48] sm:$0xf]
    %v159 = vld [vmem:[#allocation9 + $0x50] sm:$0xf]
    %v160 = vld [vmem:[#allocation9 + $0x58] sm:$0xf]
    %v161 = vld [vmem:[#allocation9 + $0x60] sm:$0xf]
    %v162 = vld [vmem:[#allocation9 + $0x68] sm:$0xf]
    %v163 = vld [vmem:[#allocation9 + $0x70] sm:$0xf]
    %v164 = vld [vmem:[#allocation9 + $0x78] sm:$0xf]
    %v165 = vpack.c.bf16 %v148, %v148
    %v166 = vld [vmem:[#allocation10 + $0x1] sm:$0x1]
    %v167 = vlaneseq
    %v168 = vshrl.u32 %v167, 7
    %v169 = vsub.s32 0, %v168
    %v170 = vrot.slane %v166, %v169
    %v187 = vunpack.c.l.b16 %v149
    %v188 = vunpack.c.l.b16 %v150
    %v189 = vunpack.c.l.b16 %v151
    %v190 = vunpack.c.l.b16 %v152
    %v191 = vunpack.c.l.b16 %v153
    %v192 = vunpack.c.l.b16 %v154
    %v193 = vunpack.c.l.b16 %v155
    %v194 = vunpack.c.l.b16 %v156
    %v195 = vunpack.c.l.b16 %v157
    %v196 = vunpack.c.l.b16 %v158
    %v197 = vunpack.c.l.b16 %v159
    %v198 = vunpack.c.l.b16 %v160
    %v199 = vunpack.c.l.b16 %v161
    %v200 = vunpack.c.l.b16 %v162
    %v201 = vunpack.c.l.b16 %v163
    %v202 = vunpack.c.l.b16 %v164
    %v203 = vpack.c.b16 %v188, %v187
    %v204 = vpack.c.b16 %v190, %v189
    %v205 = vpack.c.b16 %v192, %v191
    %v206 = vpack.c.b16 %v194, %v193
    %v207 = vpack.c.b16 %v196, %v195
    %v208 = vpack.c.b16 %v198, %v197
    %v209 = vpack.c.b16 %v200, %v199
    %v210 = vpack.c.b16 %v202, %v201
    %219 = vmatprep.subr.bf16.mxu0 0
    %220 = vmatpush1.bf16.msra.mxu0 %v203
    %221 = vmatprep.subr.bf16.mxu0 0
    %222 = vmatpush1.bf16.msra.mxu0 %v204
    %223 = vmatprep.subr.bf16.mxu0 0
    %224 = vmatpush1.bf16.msra.mxu0 %v205
    %225 = vmatprep.subr.bf16.mxu0 0
    %226 = vmatpush1.bf16.msra.mxu0 %v206
    %227 = vmatprep.subr.bf16.mxu0 0
    %228 = vmatpush1.bf16.msra.mxu0 %v207
    %229 = vmatprep.subr.bf16.mxu0 0
    %230 = vmatpush1.bf16.msra.mxu0 %v208
    %231 = vmatprep.subr.bf16.mxu0 0
    %232 = vmatpush1.bf16.msra.mxu0 %v209
    %233 = vmatprep.subr.bf16.mxu0 0
    %234 = vmatpush1.bf16.msra.mxu0 %v210
    %235 = vmatprep.subr.bf16.mxu0 0
    %236 = vmatpush1.bf16.msra.mxu0 0
    %237 = vmatprep.subr.bf16.mxu0 0
    %238 = vmatpush1.bf16.msra.mxu0 0
    %239 = vmatprep.subr.bf16.mxu0 0
    %240 = vmatpush1.bf16.msra.mxu0 0
    %241 = vmatprep.subr.bf16.mxu0 0
    %242 = vmatpush1.bf16.msra.mxu0 0
    %243 = vmatprep.subr.bf16.mxu0 0
    %244 = vmatpush1.bf16.msra.mxu0 0
    %245 = vmatprep.subr.bf16.mxu0 0
    %246 = vmatpush1.bf16.msra.mxu0 0
    %247 = vmatprep.subr.bf16.mxu0 0
    %248 = vmatpush1.bf16.msra.mxu0 0
    %249 = vmatprep.subr.bf16.mxu0 0
    %250 = vmatpush1.bf16.msra.mxu0 0
    %251 = vmatprep.mubr.bf16.mxu0 0
    %252 = vmatmul.mubr.bf16.gmra.mrb[0].mxu0 %v165
    %v253 = vpop.f32.mrb[0].mxu0
    %v254 = vadd.f32 %v170, %v253
    %v255 = vpop.f32.mrb[0].mxu0
    %v256 = vpop.f32.mrb[0].mxu0
    %v257 = vpop.f32.mrb[0].mxu0
    %258 = vdwg.mxu0
    %v259 = vmax.f32 %v254, 0.0
    %v260 = vld [vmem:[#allocation9 + $0x4] sm:$0xf]
    %v261 = vld [vmem:[#allocation9 + $0xc] sm:$0xf]
    %v262 = vld [vmem:[#allocation9 + $0x14] sm:$0xf]
    %v263 = vld [vmem:[#allocation9 + $0x1c] sm:$0xf]
    %v264 = vld [vmem:[#allocation9 + $0x24] sm:$0xf]
    %v265 = vld [vmem:[#allocation9 + $0x2c] sm:$0xf]
    %v266 = vld [vmem:[#allocation9 + $0x34] sm:$0xf]
    %v267 = vld [vmem:[#allocation9 + $0x3c] sm:$0xf]
    %v268 = vld [vmem:[#allocation9 + $0x44] sm:$0xf]
    %v269 = vld [vmem:[#allocation9 + $0x4c] sm:$0xf]
    %v270 = vld [vmem:[#allocation9 + $0x54] sm:$0xf]
    %v271 = vld [vmem:[#allocation9 + $0x5c] sm:$0xf]
    %v272 = vld [vmem:[#allocation9 + $0x64] sm:$0xf]
    %v273 = vld [vmem:[#allocation9 + $0x6c] sm:$0xf]
    %v274 = vld [vmem:[#allocation9 + $0x74] sm:$0xf]
    %v275 = vld [vmem:[#allocation9 + $0x7c] sm:$0xf]
    %v276 = vpack.c.bf16 %v259, %v259
    %v277 = vld [vmem:[#allocation10 + $0x2] sm:$0x1]
    %v278 = vlaneseq
    %v279 = vshrl.u32 %v278, 7
    %v280 = vsub.s32 0, %v279
    %v281 = vrot.slane %v277, %v280
    %v298 = vunpack.c.l.b16 %v260
    %v299 = vunpack.c.l.b16 %v261
    %v300 = vunpack.c.l.b16 %v262
    %v301 = vunpack.c.l.b16 %v263
    %v302 = vunpack.c.l.b16 %v264
    %v303 = vunpack.c.l.b16 %v265
    %v304 = vunpack.c.l.b16 %v266
    %v305 = vunpack.c.l.b16 %v267
    %v306 = vunpack.c.l.b16 %v268
    %v307 = vunpack.c.l.b16 %v269
    %v308 = vunpack.c.l.b16 %v270
    %v309 = vunpack.c.l.b16 %v271
    %v310 = vunpack.c.l.b16 %v272
    %v311 = vunpack.c.l.b16 %v273
    %v312 = vunpack.c.l.b16 %v274
    %v313 = vunpack.c.l.b16 %v275
    %v314 = vpack.c.b16 %v299, %v298
    %v315 = vpack.c.b16 %v301, %v300
    %v316 = vpack.c.b16 %v303, %v302
    %v317 = vpack.c.b16 %v305, %v304
    %v318 = vpack.c.b16 %v307, %v306
    %v319 = vpack.c.b16 %v309, %v308
    %v320 = vpack.c.b16 %v311, %v310
    %v321 = vpack.c.b16 %v313, %v312
    %330 = vmatprep.subr.bf16.mxu0 0
    %331 = vmatpush1.bf16.msra.mxu0 %v314
    %332 = vmatprep.subr.bf16.mxu0 0
    %333 = vmatpush1.bf16.msra.mxu0 %v315
    %334 = vmatprep.subr.bf16.mxu0 0
    %335 = vmatpush1.bf16.msra.mxu0 %v316
    %336 = vmatprep.subr.bf16.mxu0 0
    %337 = vmatpush1.bf16.msra.mxu0 %v317
    %338 = vmatprep.subr.bf16.mxu0 0
    %339 = vmatpush1.bf16.msra.mxu0 %v318
    %340 = vmatprep.subr.bf16.mxu0 0
    %341 = vmatpush1.bf16.msra.mxu0 %v319
    %342 = vmatprep.subr.bf16.mxu0 0
    %343 = vmatpush1.bf16.msra.mxu0 %v320
    %344 = vmatprep.subr.bf16.mxu0 0
    %345 = vmatpush1.bf16.msra.mxu0 %v321
    %346 = vmatprep.subr.bf16.mxu0 0
    %347 = vmatpush1.bf16.msra.mxu0 0
    %348 = vmatprep.subr.bf16.mxu0 0
    %349 = vmatpush1.bf16.msra.mxu0 0
    %350 = vmatprep.subr.bf16.mxu0 0
    %351 = vmatpush1.bf16.msra.mxu0 0
    %352 = vmatprep.subr.bf16.mxu0 0
    %353 = vmatpush1.bf16.msra.mxu0 0
    %354 = vmatprep.subr.bf16.mxu0 0
    %355 = vmatpush1.bf16.msra.mxu0 0
    %356 = vmatprep.subr.bf16.mxu0 0
    %357 = vmatpush1.bf16.msra.mxu0 0
    %358 = vmatprep.subr.bf16.mxu0 0
    %359 = vmatpush1.bf16.msra.mxu0 0
    %360 = vmatprep.subr.bf16.mxu0 0
    %361 = vmatpush1.bf16.msra.mxu0 0
    %362 = vmatprep.mubr.bf16.mxu0 0
    %363 = vmatmul.mubr.bf16.gmra.mrb[0].mxu0 %v276
    %v364 = vpop.f32.mrb[0].mxu0
    %v365 = vadd.f32 %v281, %v364
    %v366 = vpop.f32.mrb[0].mxu0
    %v367 = vpop.f32.mrb[0].mxu0
    %v368 = vpop.f32.mrb[0].mxu0
    %369 = vdwg.mxu0
    %v370 = vlaneseq
    %v371 = vand.u32 %v370, 127
    %vm372 = vcmp.ge.s32.totalorder %v371, 64
    %vm373 = vcmp.lt.s32.totalorder %v371, 66
    %vm374 = vmand %vm372, %vm373
    %v375 = vmax.f32 %v365, 1e-06
    %v376 = vmin.f32 %v375, 2.0
    %v377 = vsel %vm374, %v376, %v365
    %378 = vst [vmem:[#allocation12] sm:$0xff] %v377
    // Predicated region
    $region34: #{tpu_custom_call.1} parent=1 // pred_check
      _
    $region35: #{tpu_custom_call.1} parent=1 // pred_check_branch
      %380 = sbr.rel (0) target = $region37
    $region36: #{tpu_custom_call.1} parent=1 // pred_region
      %s382 = ssub.s32 128, 128
      %383 = vsyncadd [#allocation6], %s382
      %s385 = sshll.u32 [#allocation12], 4
      %s386 = int_to_ptr.vmem [resolvable:$true] %s385
      %388 = dma.vmem_to_hbm [thread:$0]  %s386, 128, %s5, [#allocation6]
    $region37: #{tpu_custom_call.1} parent=1 // pred_fallthru
      _
    // Predicated region
    $region38: #{tpu_custom_call.1} parent=1 // pred_check
      _
    $region39: #{tpu_custom_call.1} parent=1 // pred_check_branch
      %390 = sbr.rel (0) target = $region41
    $region40: #{tpu_custom_call.1} parent=1 // pred_region
      %391 = dma.done [#allocation6], 128
    $region41: #{tpu_custom_call.1} parent=1 // pred_fallthru
      _
    %392 = vsyncpa [#allocation5], 1
    %393 = vsyncpa [#allocation8], 1
    %394 = vsyncpa [#allocation11], 1
    %395 = vsyncpa [#allocation6], 1

</llo_original>
